<compile_context>
chip_gen: v5e
topology: v5e:2x2
jax: 0.10.0
libtpu: 0.0.40
codegen_flags: <defaults>
</compile_context>

<pallas_src>
import math
import jax
import jax.numpy as jnp
from jax import lax
from jax.experimental import pallas as pl
from jax.experimental.pallas import tpu as pltpu

NUM_HEADS = 8
LN_EPS = 1e-5
HS_PAD = 128          # lane-dense padded output width


def _gelu_tanh(x):
    # tanh-approximate GELU: polynomial + tanh go to the EUP slot.
    c = jnp.float32(0.7978845608028654)  # sqrt(2/pi)
    return 0.5 * x * (1.0 + jnp.tanh(c * (x + 0.044715 * x * x * x)))


def _layer_norm(x, gamma, beta):
    mean = jnp.mean(x, axis=-1, keepdims=True)
    var = jnp.mean((x - mean) ** 2, axis=-1, keepdims=True)
    return (x - mean) * lax.rsqrt(var + LN_EPS) * gamma + beta


def temporal_attention_kernel(
    x_ref, pos_ref, wqkv_ref, bqkv_ref, hmask_ref, fold_ref,
    wo_ref, vecs_ref, w1_ref, b1_ref, w2_ref, wp_ref, bp_ref,
    o_ref,
):
    f32 = jnp.float32
    bf16 = jnp.bfloat16

    pos = pos_ref[...]                       # (S, E) f32, resident
    S, E = pos.shape
    H = NUM_HEADS
    HS = H * S

    # ---- positional encoding add (per-batch block: no in-kernel tiling) ------
    x = x_ref[...].astype(f32) + pos         # (S, E)

    # ---- fused QKV projection (1/sqrt(Dh) folded into Q weight/bias) ---------
    qkv = jnp.dot(x.astype(bf16), wqkv_ref[...],
                  preferred_element_type=f32) + bqkv_ref[...]
    q = qkv[:, :E]
    k = qkv[:, E:2 * E]
    v = qkv[:, 2 * E:]

    # ---- per-head scores in a (head*query, key) row layout --------------------
    # hmask[h*S+i, e] = 1 iff column e belongs to head h (precomputed constant).
    hmask = hmask_ref[...]                   # (HS, E) f32
    q_big = jnp.broadcast_to(q[None, :, :], (H, S, E)).reshape(HS, E) * hmask
    k_t = k.T                                # (E, S): one small 32-bit transpose
    s = jnp.dot(q_big.astype(bf16), k_t.astype(bf16),
                preferred_element_type=f32)  # (HS, S)

    # ---- softmax over keys: per-(head, query) row, per-head max --------------
    m = jnp.max(s, axis=-1, keepdims=True)
    p = jnp.exp(s - m)
    denom = jnp.sum(p, axis=-1, keepdims=True)
    p = p * pl.reciprocal(denom, approx=True)          # divide -> EUP

    # ---- attention values; fold the H row-blocks back onto the lane axis -----
    o_rows = jnp.dot(p.astype(bf16), v.astype(bf16),
                     preferred_element_type=f32)       # (HS, E)
    attn = jnp.dot(fold_ref[...], (o_rows * hmask).astype(bf16),
                   preferred_element_type=f32)         # (S, E)

    vecs = vecs_ref[...]                     # rows: bo, g1, be1, b2, g2, be2
    attn = jnp.dot(attn.astype(bf16), wo_ref[...],
                   preferred_element_type=f32) + vecs[0:1, :]

    # ---- residual + layer norm 1 ----------------------------------------------
    x = _layer_norm(x + attn, vecs[1:2, :], vecs[2:3, :])

    # ---- feed-forward network ---------------------------------------------------
    h1 = jnp.dot(x.astype(bf16), w1_ref[...],
                 preferred_element_type=f32) + b1_ref[...]
    h1 = _gelu_tanh(h1)
    ffn = jnp.dot(h1.astype(bf16), w2_ref[...],
                  preferred_element_type=f32) + vecs[3:4, :]

    # ---- residual + layer norm 2 + (lane-padded) output projection --------------
    x = _layer_norm(x + ffn, vecs[4:5, :], vecs[5:6, :])
    out = jnp.dot(x.astype(bf16), wp_ref[...],
                  preferred_element_type=f32) + bp_ref[...]
    o_ref[...] = out.astype(o_ref.dtype)


# ------------------------------ wrapper ---------------------------------------
def make_attention_constants(S, E):
    """Static 0/1 matrices, hoisted out of the kernel (shape-only)."""
    H, Dh = NUM_HEADS, E // NUM_HEADS
    HS = H * S
    head_of_row = jnp.arange(HS) // S                  # (HS,)
    head_of_col = jnp.arange(E) // Dh                  # (E,)
    hmask = (head_of_row[:, None] == head_of_col[None, :]).astype(jnp.float32)
    fold = (jnp.arange(S)[:, None] == (jnp.arange(HS) % S)[None, :]).astype(jnp.bfloat16)
    return hmask, fold                                  # (HS,E) f32, (S,HS) bf16


def pack_params(p):
    """One-time packing: fuse QKV, fold softmax scale, bf16 weights, pad output."""
    E = p["wq"].shape[0]
    Hs = p["wp"].shape[1]
    scale = 1.0 / math.sqrt(E // NUM_HEADS)
    bf16 = jnp.bfloat16
    wqkv = jnp.concatenate([p["wq"] * scale, p["wk"], p["wv"]], axis=1).astype(bf16)
    bqkv = jnp.concatenate([p["bq"] * scale, p["bk"], p["bv"]], axis=1)          # (1,3E) f32
    vecs = jnp.concatenate(
        [p["bo"], p["g1"], p["be1"], p["b2"], p["g2"], p["be2"]], axis=0)        # (6,E) f32
    wp_pad = jnp.zeros((E, HS_PAD), jnp.float32).at[:, :Hs].set(p["wp"]).astype(bf16)
    bp_pad = jnp.zeros((1, HS_PAD), jnp.float32).at[:, :Hs].set(p["bp"])
    return {"wqkv": wqkv, "bqkv": bqkv, "wo": p["wo"].astype(bf16), "vecs": vecs,
            "w1": p["w1"].astype(bf16), "b1": p["b1"], "w2": p["w2"].astype(bf16),
            "wp": wp_pad, "bp": bp_pad, "hidden_size": Hs}


def temporal_attention_forward(x, pos, packed, hmask, fold):
    B, S, E = x.shape
    M = B * S
    HS = NUM_HEADS * S
    F = packed["w1"].shape[1]
    Hs = packed["hidden_size"]

    x2d = x.reshape(M, E)   # contiguous reshape: batch folded into rows

    consts = [pos, packed["wqkv"], packed["bqkv"], hmask, fold,
              packed["wo"], packed["vecs"], packed["w1"], packed["b1"],
              packed["w2"], packed["wp"], packed["bp"]]

    def resident(a):                         # full block, constant index map
        nd = a.ndim
        return pl.BlockSpec(a.shape, lambda b, _nd=nd: (0,) * _nd)

    in_specs = [pl.BlockSpec((S, E), lambda b: (b, 0))] + [resident(a) for a in consts]
    out_specs = pl.BlockSpec((S, HS_PAD), lambda b: (b, 0))

    flops = 2 * B * (S * E * 3 * E + HS * E * S + HS * S * E + S * HS * E
                     + S * E * E + S * E * F + S * F * E + S * E * HS_PAD)
    transcendentals = B * (HS * S + S * F + HS + 4 * S)
    bytes_accessed = (int(x2d.size) * 4 + M * HS_PAD * 4
                      + sum(int(a.size) * a.dtype.itemsize for a in consts))

    out2d = pl.pallas_call(
        temporal_attention_kernel,
        out_shape=jax.ShapeDtypeStruct((M, HS_PAD), jnp.float32),
        grid=(B,),
        in_specs=in_specs,
        out_specs=out_specs,
        compiler_params=pltpu.CompilerParams(
            dimension_semantics=("parallel",),
            vmem_limit_bytes=32 * 1024 * 1024),
        cost_estimate=pl.CostEstimate(flops=int(flops),
                                      transcendentals=int(transcendentals),
                                      bytes_accessed=int(bytes_accessed)),
    )(x2d, *consts)
    return out2d[:, :Hs].reshape(B, S, Hs)


# ------------------------- parameter / input setup ---------------------------
def make_pos_encoding(seq_len, d_model):
    position = jnp.arange(seq_len, dtype=jnp.float32)[:, None]
    div_term = jnp.exp(jnp.arange(0, d_model, 2, dtype=jnp.float32)
                       * -(math.log(10000.0) / d_model))
    pe = jnp.zeros((seq_len, d_model), dtype=jnp.float32)
    pe = pe.at[:, 0::2].set(jnp.sin(position * div_term))
    pe = pe.at[:, 1::2].set(jnp.cos(position * div_term))
    return pe


def make_params(key, input_dim, hidden_size):
    E, Hs = input_dim, hidden_size
    F = Hs * 4
    ks = jax.random.split(key, 10)
    s = 0.05
    # Weights stored already transposed vs PyTorch (so forward does x @ W).
    return {
        "wq": jax.random.normal(ks[0], (E, E), jnp.float32) * s,
        "bq": jax.random.normal(ks[1], (1, E), jnp.float32) * s,
        "wk": jax.random.normal(ks[2], (E, E), jnp.float32) * s,
        "bk": jax.random.normal(ks[3], (1, E), jnp.float32) * s,
        "wv": jax.random.normal(ks[4], (E, E), jnp.float32) * s,
        "bv": jax.random.normal(ks[5], (1, E), jnp.float32) * s,
        "wo": jax.random.normal(ks[6], (E, E), jnp.float32) * s,
        "bo": jnp.zeros((1, E), jnp.float32),
        "g1": jnp.ones((1, E), jnp.float32),
        "be1": jnp.zeros((1, E), jnp.float32),
        "w1": jax.random.normal(ks[7], (E, F), jnp.float32) * s,
        "b1": jnp.zeros((1, F), jnp.float32),
        "w2": jax.random.normal(ks[8], (F, E), jnp.float32) * s,
        "b2": jnp.zeros((1, E), jnp.float32),
        "g2": jnp.ones((1, E), jnp.float32),
        "be2": jnp.zeros((1, E), jnp.float32),
        "wp": jax.random.normal(ks[9], (E, Hs), jnp.float32) * s,
        "bp": jnp.zeros((1, Hs), jnp.float32),
    }


def reference_forward(x, pos, p):
    """Plain-JAX f32 reference of the PyTorch forward (eval mode, exact GELU)."""
    B, S, E = x.shape
    H, Dh = NUM_HEADS, E // NUM_HEADS
    x = x + pos[None]
    q = x @ p["wq"] + p["bq"]
    k = x @ p["wk"] + p["bk"]
    v = x @ p["wv"] + p["bv"]
    q = q.reshape(B, S, H, Dh).transpose(0, 2, 1, 3) / math.sqrt(Dh)
    k = k.reshape(B, S, H, Dh).transpose(0, 2, 1, 3)
    v = v.reshape(B, S, H, Dh).transpose(0, 2, 1, 3)
    s = jnp.einsum("bhqd,bhkd->bhqk", q, k)
    a = jax.nn.softmax(s, axis=-1)
    o = jnp.einsum("bhqk,bhkd->bhqd", a, v)
    o = o.transpose(0, 2, 1, 3).reshape(B, S, E)
    attn = o @ p["wo"] + p["bo"]

    def ln(y, g, b):
        m = jnp.mean(y, -1, keepdims=True)
        vv = jnp.mean((y - m) ** 2, -1, keepdims=True)
        return (y - m) / jnp.sqrt(vv + LN_EPS) * g + b

    x = ln(x + attn, p["g1"], p["be1"])
    h1 = jax.nn.gelu(x @ p["w1"] + p["b1"], approximate=False)
    ffn = h1 @ p["w2"] + p["b2"]
    x = ln(x + ffn, p["g2"], p["be2"])
    return x @ p["wp"] + p["bp"]


if __name__ == "__main__":
    B, S = 2, 8
    input_dim = 32      # embed_dim, divisible by num_heads=8
    hidden_size = 32    # output dim; FFN hidden = 4 * hidden_size = 128

    key = jax.random.PRNGKey(0)
    k_x, k_p = jax.random.split(key)
    x = jax.random.normal(k_x, (B, S, input_dim), jnp.float32)
    pos = make_pos_encoding(S, input_dim)
    params = make_params(k_p, input_dim, hidden_size)
    packed = pack_params(params)                       # one-time weight fusion / packing
    hmask, fold = make_attention_constants(S, input_dim)

    out = temporal_attention_forward(x, pos, packed, hmask, fold)
    out = jax.block_until_ready(out)

    ref = reference_forward(x, pos, params)
    assert out.shape == (B, S, hidden_size)
    err = float(jnp.max(jnp.abs(out - ref)))
    # bf16 MXU + tanh GELU + approx reciprocal vs f32/erf reference.
    assert jnp.allclose(out, ref, atol=5e-2, rtol=5e-2), err

    print("KERNEL_OK")
</pallas_src>

<mosaic_0001>
module attributes {stable_mosaic.version = 11 : i64} {
  func.func @temporal_attention_kernel(%arg0: i32, %arg1: memref<8x32xf32, #tpu.memory_space<vmem>>, %arg2: memref<8x32xf32, #tpu.memory_space<vmem>>, %arg3: memref<32x96xbf16, #tpu.memory_space<vmem>>, %arg4: memref<1x96xf32, #tpu.memory_space<vmem>>, %arg5: memref<64x32xf32, #tpu.memory_space<vmem>>, %arg6: memref<8x64xbf16, #tpu.memory_space<vmem>>, %arg7: memref<32x32xbf16, #tpu.memory_space<vmem>>, %arg8: memref<6x32xf32, #tpu.memory_space<vmem>>, %arg9: memref<32x128xbf16, #tpu.memory_space<vmem>>, %arg10: memref<1x128xf32, #tpu.memory_space<vmem>>, %arg11: memref<128x32xbf16, #tpu.memory_space<vmem>>, %arg12: memref<32x128xbf16, #tpu.memory_space<vmem>>, %arg13: memref<1x128xf32, #tpu.memory_space<vmem>>, %arg14: memref<8x128xf32, #tpu.memory_space<vmem>>) attributes {dimension_semantics = [#tpu.dimension_semantics<parallel>], iteration_bounds = array<i64: 2>, scalar_prefetch = 0 : i64, scratch_operands = 0 : i64, tpu.core_type = #tpu.core_type<tc>, window_params = [{transform_indices = @transform_0, window_bounds = array<i64: 8, 32>}, {pipeline_mode = #tpu.pipeline_mode<synchronous>, transform_indices = @transform_1, window_bounds = array<i64: 8, 32>}, {pipeline_mode = #tpu.pipeline_mode<synchronous>, transform_indices = @transform_2, window_bounds = array<i64: 32, 96>}, {pipeline_mode = #tpu.pipeline_mode<synchronous>, transform_indices = @transform_3, window_bounds = array<i64: 1, 96>}, {pipeline_mode = #tpu.pipeline_mode<synchronous>, transform_indices = @transform_4, window_bounds = array<i64: 64, 32>}, {pipeline_mode = #tpu.pipeline_mode<synchronous>, transform_indices = @transform_5, window_bounds = array<i64: 8, 64>}, {pipeline_mode = #tpu.pipeline_mode<synchronous>, transform_indices = @transform_6, window_bounds = array<i64: 32, 32>}, {pipeline_mode = #tpu.pipeline_mode<synchronous>, transform_indices = @transform_7, window_bounds = array<i64: 6, 32>}, {pipeline_mode = #tpu.pipeline_mode<synchronous>, transform_indices = @transform_8, window_bounds = array<i64: 32, 128>}, {pipeline_mode = #tpu.pipeline_mode<synchronous>, transform_indices = @transform_9, window_bounds = array<i64: 1, 128>}, {pipeline_mode = #tpu.pipeline_mode<synchronous>, transform_indices = @transform_10, window_bounds = array<i64: 128, 32>}, {pipeline_mode = #tpu.pipeline_mode<synchronous>, transform_indices = @transform_11, window_bounds = array<i64: 32, 128>}, {pipeline_mode = #tpu.pipeline_mode<synchronous>, transform_indices = @transform_12, window_bounds = array<i64: 1, 128>}, {transform_indices = @transform_13, window_bounds = array<i64: 8, 128>}]} {
    %c0 = arith.constant 0 : index
    %c0_0 = arith.constant 0 : index
    %0 = vector.load %arg2[%c0, %c0_0] : memref<8x32xf32, #tpu.memory_space<vmem>>, vector<8x32xf32>
    %c0_1 = arith.constant 0 : index
    %c0_2 = arith.constant 0 : index
    %1 = vector.load %arg1[%c0_1, %c0_2] : memref<8x32xf32, #tpu.memory_space<vmem>>, vector<8x32xf32>
    %2 = arith.addf %1, %0 : vector<8x32xf32>
    %3 = arith.truncf %2 : vector<8x32xf32> to vector<8x32xbf16>
    %c0_3 = arith.constant 0 : index
    %c0_4 = arith.constant 0 : index
    %4 = vector.load %arg3[%c0_3, %c0_4] : memref<32x96xbf16, #tpu.memory_space<vmem>>, vector<32x96xbf16>
    %cst = arith.constant dense<0.000000e+00> : vector<8x96xf32>
    %5 = tpu.matmul %3, %4, %cst {dimension_numbers = #tpu.dot_dimension_numbers<[1], [0], [0], [1], [0, 0, 1, 1], [], []>} : vector<8x32xbf16>, vector<32x96xbf16>, vector<8x96xf32> -> vector<8x96xf32>
    %c0_5 = arith.constant 0 : index
    %c0_6 = arith.constant 0 : index
    %6 = vector.load %arg4[%c0_5, %c0_6] : memref<1x96xf32, #tpu.memory_space<vmem>>, vector<1x96xf32>
    %7 = vector.broadcast %6 : vector<1x96xf32> to vector<8x96xf32>
    %8 = arith.addf %5, %7 : vector<8x96xf32>
    %9 = vector.extract_strided_slice %8 {offsets = [0, 0], sizes = [8, 32], strides = [1, 1]} : vector<8x96xf32> to vector<8x32xf32>
    %10 = vector.extract_strided_slice %8 {offsets = [0, 32], sizes = [8, 32], strides = [1, 1]} : vector<8x96xf32> to vector<8x32xf32>
    %11 = vector.extract_strided_slice %8 {offsets = [0, 64], sizes = [8, 32], strides = [1, 1]} : vector<8x96xf32> to vector<8x32xf32>
    %c0_7 = arith.constant 0 : index
    %c0_8 = arith.constant 0 : index
    %12 = vector.load %arg5[%c0_7, %c0_8] : memref<64x32xf32, #tpu.memory_space<vmem>>, vector<64x32xf32>
    %13 = vector.shape_cast %9 : vector<8x32xf32> to vector<1x8x32xf32>
    %14 = vector.shape_cast %13 : vector<1x8x32xf32> to vector<1x8x32xf32>
    %15 = vector.broadcast %14 : vector<1x8x32xf32> to vector<8x8x32xf32>
    %16 = vector.shape_cast %15 : vector<8x8x32xf32> to vector<64x32xf32>
    %17 = arith.mulf %16, %12 : vector<64x32xf32>
    %18 = tpu.transpose %10, [1, 0] : vector<8x32xf32> -> vector<32x8xf32>
    %19 = arith.truncf %17 : vector<64x32xf32> to vector<64x32xbf16>
    %20 = arith.truncf %18 : vector<32x8xf32> to vector<32x8xbf16>
    %cst_9 = arith.constant dense<0.000000e+00> : vector<64x8xf32>
    %21 = tpu.matmul %19, %20, %cst_9 {dimension_numbers = #tpu.dot_dimension_numbers<[1], [0], [0], [1], [0, 0, 1, 1], [], []>} : vector<64x32xbf16>, vector<32x8xbf16>, vector<64x8xf32> -> vector<64x8xf32>
    %cst_10 = arith.constant dense<0xFF800000> : vector<64xf32>
    %22 = vector.multi_reduction <maximumf>, %21, %cst_10 [1] : vector<64x8xf32> to vector<64xf32>
    %23 = vector.shape_cast %22 : vector<64xf32> to vector<64x1xf32>
    %24 = vector.broadcast %23 : vector<64x1xf32> to vector<64x8xf32>
    %25 = arith.subf %21, %24 : vector<64x8xf32>
    %26 = math.exp %25 : vector<64x8xf32>
    %cst_11 = arith.constant dense<0.000000e+00> : vector<64xf32>
    %27 = vector.multi_reduction <add>, %26, %cst_11 [1] : vector<64x8xf32> to vector<64xf32>
    %28 = vector.shape_cast %27 : vector<64xf32> to vector<64x1xf32>
    %29 = tpu.reciprocal %28 {approx = true} : vector<64x1xf32> -> vector<64x1xf32>
    %30 = vector.broadcast %29 : vector<64x1xf32> to vector<64x8xf32>
    %31 = arith.mulf %26, %30 : vector<64x8xf32>
    %32 = arith.truncf %31 : vector<64x8xf32> to vector<64x8xbf16>
    %33 = arith.truncf %11 : vector<8x32xf32> to vector<8x32xbf16>
    %cst_12 = arith.constant dense<0.000000e+00> : vector<64x32xf32>
    %34 = tpu.matmul %32, %33, %cst_12 {dimension_numbers = #tpu.dot_dimension_numbers<[1], [0], [0], [1], [0, 0, 1, 1], [], []>} : vector<64x8xbf16>, vector<8x32xbf16>, vector<64x32xf32> -> vector<64x32xf32>
    %c0_13 = arith.constant 0 : index
    %c0_14 = arith.constant 0 : index
    %35 = vector.load %arg6[%c0_13, %c0_14] : memref<8x64xbf16, #tpu.memory_space<vmem>>, vector<8x64xbf16>
    %36 = arith.mulf %34, %12 : vector<64x32xf32>
    %37 = arith.truncf %36 : vector<64x32xf32> to vector<64x32xbf16>
    %cst_15 = arith.constant dense<0.000000e+00> : vector<8x32xf32>
    %38 = tpu.matmul %35, %37, %cst_15 {dimension_numbers = #tpu.dot_dimension_numbers<[1], [0], [0], [1], [0, 0, 1, 1], [], []>} : vector<8x64xbf16>, vector<64x32xbf16>, vector<8x32xf32> -> vector<8x32xf32>
    %c0_16 = arith.constant 0 : index
    %c0_17 = arith.constant 0 : index
    %39 = vector.load %arg8[%c0_16, %c0_17] : memref<6x32xf32, #tpu.memory_space<vmem>>, vector<6x32xf32>
    %40 = arith.truncf %38 : vector<8x32xf32> to vector<8x32xbf16>
    %c0_18 = arith.constant 0 : index
    %c0_19 = arith.constant 0 : index
    %41 = vector.load %arg7[%c0_18, %c0_19] : memref<32x32xbf16, #tpu.memory_space<vmem>>, vector<32x32xbf16>
    %cst_20 = arith.constant dense<0.000000e+00> : vector<8x32xf32>
    %42 = tpu.matmul %40, %41, %cst_20 {dimension_numbers = #tpu.dot_dimension_numbers<[1], [0], [0], [1], [0, 0, 1, 1], [], []>} : vector<8x32xbf16>, vector<32x32xbf16>, vector<8x32xf32> -> vector<8x32xf32>
    %43 = vector.extract_strided_slice %39 {offsets = [0, 0], sizes = [1, 32], strides = [1, 1]} : vector<6x32xf32> to vector<1x32xf32>
    %44 = vector.broadcast %43 : vector<1x32xf32> to vector<8x32xf32>
    %45 = arith.addf %42, %44 : vector<8x32xf32>
    %46 = arith.addf %2, %45 : vector<8x32xf32>
    %47 = vector.extract_strided_slice %39 {offsets = [1, 0], sizes = [1, 32], strides = [1, 1]} : vector<6x32xf32> to vector<1x32xf32>
    %48 = vector.extract_strided_slice %39 {offsets = [2, 0], sizes = [1, 32], strides = [1, 1]} : vector<6x32xf32> to vector<1x32xf32>
    %cst_21 = arith.constant dense<0.000000e+00> : vector<8xf32>
    %49 = vector.multi_reduction <add>, %46, %cst_21 [1] : vector<8x32xf32> to vector<8xf32>
    %50 = vector.shape_cast %49 : vector<8xf32> to vector<8x1xf32>
    %cst_22 = arith.constant 3.200000e+01 : f32
    %51 = vector.broadcast %cst_22 : f32 to vector<8x1xf32>
    %52 = arith.divf %50, %51 : vector<8x1xf32>
    %53 = vector.broadcast %52 : vector<8x1xf32> to vector<8x32xf32>
    %54 = arith.subf %46, %53 : vector<8x32xf32>
    %55 = arith.mulf %54, %54 : vector<8x32xf32>
    %cst_23 = arith.constant dense<0.000000e+00> : vector<8xf32>
    %56 = vector.multi_reduction <add>, %55, %cst_23 [1] : vector<8x32xf32> to vector<8xf32>
    %57 = vector.shape_cast %56 : vector<8xf32> to vector<8x1xf32>
    %cst_24 = arith.constant 3.200000e+01 : f32
    %58 = vector.broadcast %cst_24 : f32 to vector<8x1xf32>
    %59 = arith.divf %57, %58 : vector<8x1xf32>
    %60 = vector.broadcast %52 : vector<8x1xf32> to vector<8x32xf32>
    %61 = arith.subf %46, %60 : vector<8x32xf32>
    %cst_25 = arith.constant 9.99999974E-6 : f32
    %62 = vector.broadcast %cst_25 : f32 to vector<8x1xf32>
    %63 = arith.addf %59, %62 : vector<8x1xf32>
    %64 = math.rsqrt %63 : vector<8x1xf32>
    %65 = vector.broadcast %64 : vector<8x1xf32> to vector<8x32xf32>
    %66 = arith.mulf %61, %65 : vector<8x32xf32>
    %67 = vector.broadcast %47 : vector<1x32xf32> to vector<8x32xf32>
    %68 = arith.mulf %66, %67 : vector<8x32xf32>
    %69 = vector.broadcast %48 : vector<1x32xf32> to vector<8x32xf32>
    %70 = arith.addf %68, %69 : vector<8x32xf32>
    %71 = arith.truncf %70 : vector<8x32xf32> to vector<8x32xbf16>
    %c0_26 = arith.constant 0 : index
    %c0_27 = arith.constant 0 : index
    %72 = vector.load %arg9[%c0_26, %c0_27] : memref<32x128xbf16, #tpu.memory_space<vmem>>, vector<32x128xbf16>
    %cst_28 = arith.constant dense<0.000000e+00> : vector<8x128xf32>
    %73 = tpu.matmul %71, %72, %cst_28 {dimension_numbers = #tpu.dot_dimension_numbers<[1], [0], [0], [1], [0, 0, 1, 1], [], []>} : vector<8x32xbf16>, vector<32x128xbf16>, vector<8x128xf32> -> vector<8x128xf32>
    %c0_29 = arith.constant 0 : index
    %c0_30 = arith.constant 0 : index
    %74 = vector.load %arg10[%c0_29, %c0_30] : memref<1x128xf32, #tpu.memory_space<vmem>>, vector<1x128xf32>
    %75 = vector.broadcast %74 : vector<1x128xf32> to vector<8x128xf32>
    %76 = arith.addf %73, %75 : vector<8x128xf32>
    %cst_31 = arith.constant 5.000000e-01 : f32
    %77 = vector.broadcast %cst_31 : f32 to vector<8x128xf32>
    %78 = arith.mulf %77, %76 : vector<8x128xf32>
    %cst_32 = arith.constant 4.471500e-02 : f32
    %79 = vector.broadcast %cst_32 : f32 to vector<8x128xf32>
    %80 = arith.mulf %79, %76 : vector<8x128xf32>
    %81 = arith.mulf %80, %76 : vector<8x128xf32>
    %82 = arith.mulf %81, %76 : vector<8x128xf32>
    %83 = arith.addf %76, %82 : vector<8x128xf32>
    %cst_33 = arith.constant 0.797884583 : f32
    %84 = vector.broadcast %cst_33 : f32 to vector<8x128xf32>
    %85 = arith.mulf %84, %83 : vector<8x128xf32>
    %86 = math.tanh %85 : vector<8x128xf32>
    %cst_34 = arith.constant 1.000000e+00 : f32
    %87 = vector.broadcast %cst_34 : f32 to vector<8x128xf32>
    %88 = arith.addf %87, %86 : vector<8x128xf32>
    %89 = arith.mulf %78, %88 : vector<8x128xf32>
    %90 = arith.truncf %89 : vector<8x128xf32> to vector<8x128xbf16>
    %c0_35 = arith.constant 0 : index
    %c0_36 = arith.constant 0 : index
    %91 = vector.load %arg11[%c0_35, %c0_36] : memref<128x32xbf16, #tpu.memory_space<vmem>>, vector<128x32xbf16>
    %cst_37 = arith.constant dense<0.000000e+00> : vector<8x32xf32>
    %92 = tpu.matmul %90, %91, %cst_37 {dimension_numbers = #tpu.dot_dimension_numbers<[1], [0], [0], [1], [0, 0, 1, 1], [], []>} : vector<8x128xbf16>, vector<128x32xbf16>, vector<8x32xf32> -> vector<8x32xf32>
    %93 = vector.extract_strided_slice %39 {offsets = [3, 0], sizes = [1, 32], strides = [1, 1]} : vector<6x32xf32> to vector<1x32xf32>
    %94 = vector.broadcast %93 : vector<1x32xf32> to vector<8x32xf32>
    %95 = arith.addf %92, %94 : vector<8x32xf32>
    %96 = arith.addf %70, %95 : vector<8x32xf32>
    %97 = vector.extract_strided_slice %39 {offsets = [4, 0], sizes = [1, 32], strides = [1, 1]} : vector<6x32xf32> to vector<1x32xf32>
    %98 = vector.extract_strided_slice %39 {offsets = [5, 0], sizes = [1, 32], strides = [1, 1]} : vector<6x32xf32> to vector<1x32xf32>
    %cst_38 = arith.constant dense<0.000000e+00> : vector<8xf32>
    %99 = vector.multi_reduction <add>, %96, %cst_38 [1] : vector<8x32xf32> to vector<8xf32>
    %100 = vector.shape_cast %99 : vector<8xf32> to vector<8x1xf32>
    %cst_39 = arith.constant 3.200000e+01 : f32
    %101 = vector.broadcast %cst_39 : f32 to vector<8x1xf32>
    %102 = arith.divf %100, %101 : vector<8x1xf32>
    %103 = vector.broadcast %102 : vector<8x1xf32> to vector<8x32xf32>
    %104 = arith.subf %96, %103 : vector<8x32xf32>
    %105 = arith.mulf %104, %104 : vector<8x32xf32>
    %cst_40 = arith.constant dense<0.000000e+00> : vector<8xf32>
    %106 = vector.multi_reduction <add>, %105, %cst_40 [1] : vector<8x32xf32> to vector<8xf32>
    %107 = vector.shape_cast %106 : vector<8xf32> to vector<8x1xf32>
    %cst_41 = arith.constant 3.200000e+01 : f32
    %108 = vector.broadcast %cst_41 : f32 to vector<8x1xf32>
    %109 = arith.divf %107, %108 : vector<8x1xf32>
    %110 = vector.broadcast %102 : vector<8x1xf32> to vector<8x32xf32>
    %111 = arith.subf %96, %110 : vector<8x32xf32>
    %cst_42 = arith.constant 9.99999974E-6 : f32
    %112 = vector.broadcast %cst_42 : f32 to vector<8x1xf32>
    %113 = arith.addf %109, %112 : vector<8x1xf32>
    %114 = math.rsqrt %113 : vector<8x1xf32>
    %115 = vector.broadcast %114 : vector<8x1xf32> to vector<8x32xf32>
    %116 = arith.mulf %111, %115 : vector<8x32xf32>
    %117 = vector.broadcast %97 : vector<1x32xf32> to vector<8x32xf32>
    %118 = arith.mulf %116, %117 : vector<8x32xf32>
    %119 = vector.broadcast %98 : vector<1x32xf32> to vector<8x32xf32>
    %120 = arith.addf %118, %119 : vector<8x32xf32>
    %121 = arith.truncf %120 : vector<8x32xf32> to vector<8x32xbf16>
    %c0_43 = arith.constant 0 : index
    %c0_44 = arith.constant 0 : index
    %122 = vector.load %arg12[%c0_43, %c0_44] : memref<32x128xbf16, #tpu.memory_space<vmem>>, vector<32x128xbf16>
    %cst_45 = arith.constant dense<0.000000e+00> : vector<8x128xf32>
    %123 = tpu.matmul %121, %122, %cst_45 {dimension_numbers = #tpu.dot_dimension_numbers<[1], [0], [0], [1], [0, 0, 1, 1], [], []>} : vector<8x32xbf16>, vector<32x128xbf16>, vector<8x128xf32> -> vector<8x128xf32>
    %c0_46 = arith.constant 0 : index
    %c0_47 = arith.constant 0 : index
    %124 = vector.load %arg13[%c0_46, %c0_47] : memref<1x128xf32, #tpu.memory_space<vmem>>, vector<1x128xf32>
    %125 = vector.broadcast %124 : vector<1x128xf32> to vector<8x128xf32>
    %126 = arith.addf %123, %125 : vector<8x128xf32>
    %c0_48 = arith.constant 0 : index
    %c0_49 = arith.constant 0 : index
    %127 = vector.load %arg14[%c0_48, %c0_49] : memref<8x128xf32, #tpu.memory_space<vmem>>, vector<8x128xf32>
    tpu.vector_store %arg14[%c0_48, %c0_49], %126 {strides = array<i32>} : memref<8x128xf32, #tpu.memory_space<vmem>>, vector<8x128xf32>,
    return
  }
  func.func @transform_0(%arg0: i32) -> (i32, i32) {
    %c0_i32 = arith.constant 0 : i32
    %c0_i32_0 = arith.constant 0 : i32
    return %arg0, %c0_i32 : i32, i32
  }
  func.func @transform_1(%arg0: i32) -> (i32, i32) {
    %c0_i32 = arith.constant 0 : i32
    %c0_i32_0 = arith.constant 0 : i32
    %c0_i32_1 = arith.constant 0 : i32
    return %c0_i32, %c0_i32_0 : i32, i32
  }
  func.func @transform_2(%arg0: i32) -> (i32, i32) {
    %c0_i32 = arith.constant 0 : i32
    %c0_i32_0 = arith.constant 0 : i32
    %c0_i32_1 = arith.constant 0 : i32
    return %c0_i32, %c0_i32_0 : i32, i32
  }
  func.func @transform_3(%arg0: i32) -> (i32, i32) {
    %c0_i32 = arith.constant 0 : i32
    %c0_i32_0 = arith.constant 0 : i32
    %c0_i32_1 = arith.constant 0 : i32
    return %c0_i32, %c0_i32_0 : i32, i32
  }
  func.func @transform_4(%arg0: i32) -> (i32, i32) {
    %c0_i32 = arith.constant 0 : i32
    %c0_i32_0 = arith.constant 0 : i32
    %c0_i32_1 = arith.constant 0 : i32
    return %c0_i32, %c0_i32_0 : i32, i32
  }
  func.func @transform_5(%arg0: i32) -> (i32, i32) {
    %c0_i32 = arith.constant 0 : i32
    %c0_i32_0 = arith.constant 0 : i32
    %c0_i32_1 = arith.constant 0 : i32
    return %c0_i32, %c0_i32_0 : i32, i32
  }
  func.func @transform_6(%arg0: i32) -> (i32, i32) {
    %c0_i32 = arith.constant 0 : i32
    %c0_i32_0 = arith.constant 0 : i32
    %c0_i32_1 = arith.constant 0 : i32
    return %c0_i32, %c0_i32_0 : i32, i32
  }
  func.func @transform_7(%arg0: i32) -> (i32, i32) {
    %c0_i32 = arith.constant 0 : i32
    %c0_i32_0 = arith.constant 0 : i32
    %c0_i32_1 = arith.constant 0 : i32
    return %c0_i32, %c0_i32_0 : i32, i32
  }
  func.func @transform_8(%arg0: i32) -> (i32, i32) {
    %c0_i32 = arith.constant 0 : i32
    %c0_i32_0 = arith.constant 0 : i32
    %c0_i32_1 = arith.constant 0 : i32
    return %c0_i32, %c0_i32_0 : i32, i32
  }
  func.func @transform_9(%arg0: i32) -> (i32, i32) {
    %c0_i32 = arith.constant 0 : i32
    %c0_i32_0 = arith.constant 0 : i32
    %c0_i32_1 = arith.constant 0 : i32
    return %c0_i32, %c0_i32_0 : i32, i32
  }
  func.func @transform_10(%arg0: i32) -> (i32, i32) {
    %c0_i32 = arith.constant 0 : i32
    %c0_i32_0 = arith.constant 0 : i32
    %c0_i32_1 = arith.constant 0 : i32
    return %c0_i32, %c0_i32_0 : i32, i32
  }
  func.func @transform_11(%arg0: i32) -> (i32, i32) {
    %c0_i32 = arith.constant 0 : i32
    %c0_i32_0 = arith.constant 0 : i32
    %c0_i32_1 = arith.constant 0 : i32
    return %c0_i32, %c0_i32_0 : i32, i32
  }
  func.func @transform_12(%arg0: i32) -> (i32, i32) {
    %c0_i32 = arith.constant 0 : i32
    %c0_i32_0 = arith.constant 0 : i32
    %c0_i32_1 = arith.constant 0 : i32
    return %c0_i32, %c0_i32_0 : i32, i32
  }
  func.func @transform_13(%arg0: i32) -> (i32, i32) {
    %c0_i32 = arith.constant 0 : i32
    %c0_i32_0 = arith.constant 0 : i32
    return %arg0, %c0_i32 : i32, i32
  }
}

</mosaic_0001>

<llo_original>
// kernel: tpu_custom_call.1
$region0: #{tpu_custom_call.1}
  #allocation0 [shape = 'u32[]', space=smem, size = 0x4, offset = 0x4, fixed_abs, tag = 'smem constant byte address 0x4 - core index']
  #allocation1 [shape = 'u32[72,128]{1,0:T(1,128)}', space=vmem, size = 0x9000, scoped, tag = 'internal scratch']
  %s0 = inlined_call_operand.vmem [shape: f32[16,32], index: 0, kind: input, shape index: {}]
  %s1 = inlined_call_operand.vmem [shape: f32[8,32], index: 1, kind: input, shape index: {}]
  %s2 = inlined_call_operand.vmem [shape: bf16[32,96], index: 2, kind: input, shape index: {}]
  %s3 = inlined_call_operand.vmem [shape: f32[1,96], index: 3, kind: input, shape index: {}]
  %s4 = inlined_call_operand.vmem [shape: f32[64,32], index: 4, kind: input, shape index: {}]
  %s5 = inlined_call_operand.vmem [shape: bf16[8,64], index: 5, kind: input, shape index: {}]
  %s6 = inlined_call_operand.vmem [shape: bf16[32,32], index: 6, kind: input, shape index: {}]
  %s7 = inlined_call_operand.vmem [shape: f32[6,32], index: 7, kind: input, shape index: {}]
  %s8 = inlined_call_operand.vmem [shape: bf16[32,128], index: 8, kind: input, shape index: {}]
  %s9 = inlined_call_operand.vmem [shape: f32[1,128], index: 9, kind: input, shape index: {}]
  %s10 = inlined_call_operand.vmem [shape: bf16[128,32], index: 10, kind: input, shape index: {}]
  %s11 = inlined_call_operand.vmem [shape: bf16[32,128], index: 11, kind: input, shape index: {}]
  %s12 = inlined_call_operand.vmem [shape: f32[1,128], index: 12, kind: input, shape index: {}]
  %s13 = inlined_call_operand.hbm [shape: f32[16,128], index: 13, kind: output, shape index: {}]
  %s14 = sld [smem:[#allocation0]]
  $region85: #{tpu_custom_call.1} parent=0
    _
  %s16 = ssub.s32 1, %s14
  %s17 = scalar_select 0, %s16, %s14
  $region1: #{tpu_custom_call.1} parent=0
    #allocation2 [shape = 'u8[8192]{0}', space=vmem, size = 0x2000, scoped, tag = 'output window, operand 0']
    #allocation3 [shape = 's32[2]{0}', space=sflag, size = 0x8, scoped, tag = 'scoped memory for tpu_custom_call.1']
    %18 = vsyncpa [#allocation3], 0
    %s19 = scalar_lea.sflag [#allocation3], 1
    %20 = vsyncpa %s19, 0
    loop: start=0, step=1, limit=4
    $region2: #{tpu_custom_call.1} parent=1 // loop_pre_header
      _
    $region3: #{tpu_custom_call.1} parent=1 // loop_header
      %s22 = sphi 0, %s26
      %p23 = scmp.ge.s32.totalorder %s22, 4
      %s32 = sphi 0, %s34
      %s35 = sphi 0, %s32
      %s36 = sphi 0, %s35
      %s52 = sphi 0, %s36
      %s56 = sphi 0, %s56
      %s58 = sphi 0, %s56
      %s59 = sphi 0, %s58
      %s73 = sphi 0, %s59
      %s77 = sphi 0, %s77
      %s79 = sphi 0, %s77
      %s80 = sphi 0, %s79
      %s94 = sphi 0, %s80
      %s98 = sphi 0, %s98
      %s100 = sphi 0, %s98
      %s101 = sphi 0, %s100
      %s115 = sphi 0, %s101
      %s119 = sphi 0, %s119
      %s121 = sphi 0, %s119
      %s122 = sphi 0, %s121
      %s136 = sphi 0, %s122
      %s140 = sphi 0, %s140
      %s142 = sphi 0, %s140
      %s143 = sphi 0, %s142
      %s157 = sphi 0, %s143
      %s161 = sphi 0, %s161
      %s163 = sphi 0, %s161
      %s164 = sphi 0, %s163
      %s178 = sphi 0, %s164
      %s182 = sphi 0, %s182
      %s184 = sphi 0, %s182
      %s185 = sphi 0, %s184
      %s199 = sphi 0, %s185
      %s203 = sphi 0, %s203
      %s205 = sphi 0, %s203
      %s206 = sphi 0, %s205
      %s220 = sphi 0, %s206
      %s224 = sphi 0, %s224
      %s226 = sphi 0, %s224
      %s227 = sphi 0, %s226
      %s241 = sphi 0, %s227
      %s245 = sphi 0, %s245
      %s247 = sphi 0, %s245
      %s248 = sphi 0, %s247
      %s262 = sphi 0, %s248
      %s266 = sphi 0, %s266
      %s268 = sphi 0, %s266
      %s269 = sphi 0, %s268
      %s283 = sphi 0, %s269
      %s287 = sphi 0, %s287
      %s289 = sphi 0, %s287
      %s290 = sphi 0, %s289
      %s304 = sphi 0, %s290
      %s310 = sphi 0, %s312
      %s313 = sphi 0, %s310
      %s314 = sphi 0, %s313
      %s330 = sphi 0, %s314
    $region4: #{tpu_custom_call.1} parent=1 // loop_header_branch
      %25 = sbr.rel (%p23) target = $region8
    $region5: #{tpu_custom_call.1} parent=1 // loop_body
      %s27 = ssub.s32 %s22, 1
      %s28 = ssub.s32 %s22, 2
      %s29 = sadd.s32 %s22, 1
      %s30 = ssub.s32 %s22, %s29
      %p31 = scmp.eq.s32.totalorder %s30, 0
      %s33 = sadd.s32 %s32, 1
      %s34 = scalar_select %p31, %s32, %s33
      %p37 = pneg %p31
      %p38 = scmp.eq.s32.totalorder %s22, 1
      %p39 = por %p37, %p38
      %p40 = scmp.ne.s32.totalorder %s32, %s35
      %p41 = scmp.eq.s32.totalorder %s22, 0
      %p42 = por %p40, %p41
      %p43 = scmp.ne.s32.totalorder %s32, %s35
      %p44 = scmp.eq.s32.totalorder %s27, 1
      %p45 = por %p43, %p44
      %p46 = scmp.ne.s32.totalorder %s35, %s36
      %p47 = scmp.eq.s32.totalorder %s27, 0
      %p48 = por %p46, %p47
      %p49 = scmp.ne.s32.totalorder %s35, %s36
      %p50 = scmp.eq.s32.totalorder %s28, 1
      %p51 = por %p49, %p50
      %p53 = scmp.ne.s32.totalorder %s36, %s52
      %p54 = scmp.eq.s32.totalorder %s28, 0
      %p55 = por %p53, %p54
      %s57 = sadd.s32 %s56, 1
      %p60 = scmp.eq.s32.totalorder %s22, 1
      %p61 = scmp.ne.s32.totalorder %s56, %s58
      %p62 = scmp.eq.s32.totalorder %s22, 0
      %p63 = por %p61, %p62
      %p64 = scmp.ne.s32.totalorder %s56, %s58
      %p65 = scmp.eq.s32.totalorder %s27, 1
      %p66 = por %p64, %p65
      %p67 = scmp.ne.s32.totalorder %s58, %s59
      %p68 = scmp.eq.s32.totalorder %s27, 0
      %p69 = por %p67, %p68
      %p70 = scmp.ne.s32.totalorder %s58, %s59
      %p71 = scmp.eq.s32.totalorder %s28, 1
      %p72 = por %p70, %p71
      %p74 = scmp.ne.s32.totalorder %s59, %s73
      %p75 = scmp.eq.s32.totalorder %s28, 0
      %p76 = por %p74, %p75
      %s78 = sadd.s32 %s77, 1
      %p81 = scmp.eq.s32.totalorder %s22, 1
      %p82 = scmp.ne.s32.totalorder %s77, %s79
      %p83 = scmp.eq.s32.totalorder %s22, 0
      %p84 = por %p82, %p83
      %p85 = scmp.ne.s32.totalorder %s77, %s79
      %p86 = scmp.eq.s32.totalorder %s27, 1
      %p87 = por %p85, %p86
      %p88 = scmp.ne.s32.totalorder %s79, %s80
      %p89 = scmp.eq.s32.totalorder %s27, 0
      %p90 = por %p88, %p89
      %p91 = scmp.ne.s32.totalorder %s79, %s80
      %p92 = scmp.eq.s32.totalorder %s28, 1
      %p93 = por %p91, %p92
      %p95 = scmp.ne.s32.totalorder %s80, %s94
      %p96 = scmp.eq.s32.totalorder %s28, 0
      %p97 = por %p95, %p96
      %s99 = sadd.s32 %s98, 1
      %p102 = scmp.eq.s32.totalorder %s22, 1
      %p103 = scmp.ne.s32.totalorder %s98, %s100
      %p104 = scmp.eq.s32.totalorder %s22, 0
      %p105 = por %p103, %p104
      %p106 = scmp.ne.s32.totalorder %s98, %s100
      %p107 = scmp.eq.s32.totalorder %s27, 1
      %p108 = por %p106, %p107
      %p109 = scmp.ne.s32.totalorder %s100, %s101
      %p110 = scmp.eq.s32.totalorder %s27, 0
      %p111 = por %p109, %p110
      %p112 = scmp.ne.s32.totalorder %s100, %s101
      %p113 = scmp.eq.s32.totalorder %s28, 1
      %p114 = por %p112, %p113
      %p116 = scmp.ne.s32.totalorder %s101, %s115
      %p117 = scmp.eq.s32.totalorder %s28, 0
      %p118 = por %p116, %p117
      %s120 = sadd.s32 %s119, 1
      %p123 = scmp.eq.s32.totalorder %s22, 1
      %p124 = scmp.ne.s32.totalorder %s119, %s121
      %p125 = scmp.eq.s32.totalorder %s22, 0
      %p126 = por %p124, %p125
      %p127 = scmp.ne.s32.totalorder %s119, %s121
      %p128 = scmp.eq.s32.totalorder %s27, 1
      %p129 = por %p127, %p128
      %p130 = scmp.ne.s32.totalorder %s121, %s122
      %p131 = scmp.eq.s32.totalorder %s27, 0
      %p132 = por %p130, %p131
      %p133 = scmp.ne.s32.totalorder %s121, %s122
      %p134 = scmp.eq.s32.totalorder %s28, 1
      %p135 = por %p133, %p134
      %p137 = scmp.ne.s32.totalorder %s122, %s136
      %p138 = scmp.eq.s32.totalorder %s28, 0
      %p139 = por %p137, %p138
      %s141 = sadd.s32 %s140, 1
      %p144 = scmp.eq.s32.totalorder %s22, 1
      %p145 = scmp.ne.s32.totalorder %s140, %s142
      %p146 = scmp.eq.s32.totalorder %s22, 0
      %p147 = por %p145, %p146
      %p148 = scmp.ne.s32.totalorder %s140, %s142
      %p149 = scmp.eq.s32.totalorder %s27, 1
      %p150 = por %p148, %p149
      %p151 = scmp.ne.s32.totalorder %s142, %s143
      %p152 = scmp.eq.s32.totalorder %s27, 0
      %p153 = por %p151, %p152
      %p154 = scmp.ne.s32.totalorder %s142, %s143
      %p155 = scmp.eq.s32.totalorder %s28, 1
      %p156 = por %p154, %p155
      %p158 = scmp.ne.s32.totalorder %s143, %s157
      %p159 = scmp.eq.s32.totalorder %s28, 0
      %p160 = por %p158, %p159
      %s162 = sadd.s32 %s161, 1
      %p165 = scmp.eq.s32.totalorder %s22, 1
      %p166 = scmp.ne.s32.totalorder %s161, %s163
      %p167 = scmp.eq.s32.totalorder %s22, 0
      %p168 = por %p166, %p167
      %p169 = scmp.ne.s32.totalorder %s161, %s163
      %p170 = scmp.eq.s32.totalorder %s27, 1
      %p171 = por %p169, %p170
      %p172 = scmp.ne.s32.totalorder %s163, %s164
      %p173 = scmp.eq.s32.totalorder %s27, 0
      %p174 = por %p172, %p173
      %p175 = scmp.ne.s32.totalorder %s163, %s164
      %p176 = scmp.eq.s32.totalorder %s28, 1
      %p177 = por %p175, %p176
      %p179 = scmp.ne.s32.totalorder %s164, %s178
      %p180 = scmp.eq.s32.totalorder %s28, 0
      %p181 = por %p179, %p180
      %s183 = sadd.s32 %s182, 1
      %p186 = scmp.eq.s32.totalorder %s22, 1
      %p187 = scmp.ne.s32.totalorder %s182, %s184
      %p188 = scmp.eq.s32.totalorder %s22, 0
      %p189 = por %p187, %p188
      %p190 = scmp.ne.s32.totalorder %s182, %s184
      %p191 = scmp.eq.s32.totalorder %s27, 1
      %p192 = por %p190, %p191
      %p193 = scmp.ne.s32.totalorder %s184, %s185
      %p194 = scmp.eq.s32.totalorder %s27, 0
      %p195 = por %p193, %p194
      %p196 = scmp.ne.s32.totalorder %s184, %s185
      %p197 = scmp.eq.s32.totalorder %s28, 1
      %p198 = por %p196, %p197
      %p200 = scmp.ne.s32.totalorder %s185, %s199
      %p201 = scmp.eq.s32.totalorder %s28, 0
      %p202 = por %p200, %p201
      %s204 = sadd.s32 %s203, 1
      %p207 = scmp.eq.s32.totalorder %s22, 1
      %p208 = scmp.ne.s32.totalorder %s203, %s205
      %p209 = scmp.eq.s32.totalorder %s22, 0
      %p210 = por %p208, %p209
      %p211 = scmp.ne.s32.totalorder %s203, %s205
      %p212 = scmp.eq.s32.totalorder %s27, 1
      %p213 = por %p211, %p212
      %p214 = scmp.ne.s32.totalorder %s205, %s206
      %p215 = scmp.eq.s32.totalorder %s27, 0
      %p216 = por %p214, %p215
      %p217 = scmp.ne.s32.totalorder %s205, %s206
      %p218 = scmp.eq.s32.totalorder %s28, 1
      %p219 = por %p217, %p218
      %p221 = scmp.ne.s32.totalorder %s206, %s220
      %p222 = scmp.eq.s32.totalorder %s28, 0
      %p223 = por %p221, %p222
      %s225 = sadd.s32 %s224, 1
      %p228 = scmp.eq.s32.totalorder %s22, 1
      %p229 = scmp.ne.s32.totalorder %s224, %s226
      %p230 = scmp.eq.s32.totalorder %s22, 0
      %p231 = por %p229, %p230
      %p232 = scmp.ne.s32.totalorder %s224, %s226
      %p233 = scmp.eq.s32.totalorder %s27, 1
      %p234 = por %p232, %p233
      %p235 = scmp.ne.s32.totalorder %s226, %s227
      %p236 = scmp.eq.s32.totalorder %s27, 0
      %p237 = por %p235, %p236
      %p238 = scmp.ne.s32.totalorder %s226, %s227
      %p239 = scmp.eq.s32.totalorder %s28, 1
      %p240 = por %p238, %p239
      %p242 = scmp.ne.s32.totalorder %s227, %s241
      %p243 = scmp.eq.s32.totalorder %s28, 0
      %p244 = por %p242, %p243
      %s246 = sadd.s32 %s245, 1
      %p249 = scmp.eq.s32.totalorder %s22, 1
      %p250 = scmp.ne.s32.totalorder %s245, %s247
      %p251 = scmp.eq.s32.totalorder %s22, 0
      %p252 = por %p250, %p251
      %p253 = scmp.ne.s32.totalorder %s245, %s247
      %p254 = scmp.eq.s32.totalorder %s27, 1
      %p255 = por %p253, %p254
      %p256 = scmp.ne.s32.totalorder %s247, %s248
      %p257 = scmp.eq.s32.totalorder %s27, 0
      %p258 = por %p256, %p257
      %p259 = scmp.ne.s32.totalorder %s247, %s248
      %p260 = scmp.eq.s32.totalorder %s28, 1
      %p261 = por %p259, %p260
      %p263 = scmp.ne.s32.totalorder %s248, %s262
      %p264 = scmp.eq.s32.totalorder %s28, 0
      %p265 = por %p263, %p264
      %s267 = sadd.s32 %s266, 1
      %p270 = scmp.eq.s32.totalorder %s22, 1
      %p271 = scmp.ne.s32.totalorder %s266, %s268
      %p272 = scmp.eq.s32.totalorder %s22, 0
      %p273 = por %p271, %p272
      %p274 = scmp.ne.s32.totalorder %s266, %s268
      %p275 = scmp.eq.s32.totalorder %s27, 1
      %p276 = por %p274, %p275
      %p277 = scmp.ne.s32.totalorder %s268, %s269
      %p278 = scmp.eq.s32.totalorder %s27, 0
      %p279 = por %p277, %p278
      %p280 = scmp.ne.s32.totalorder %s268, %s269
      %p281 = scmp.eq.s32.totalorder %s28, 1
      %p282 = por %p280, %p281
      %p284 = scmp.ne.s32.totalorder %s269, %s283
      %p285 = scmp.eq.s32.totalorder %s28, 0
      %p286 = por %p284, %p285
      %s288 = sadd.s32 %s287, 1
      %p291 = scmp.eq.s32.totalorder %s22, 1
      %p292 = scmp.ne.s32.totalorder %s287, %s289
      %p293 = scmp.eq.s32.totalorder %s22, 0
      %p294 = por %p292, %p293
      %p295 = scmp.ne.s32.totalorder %s287, %s289
      %p296 = scmp.eq.s32.totalorder %s27, 1
      %p297 = por %p295, %p296
      %p298 = scmp.ne.s32.totalorder %s289, %s290
      %p299 = scmp.eq.s32.totalorder %s27, 0
      %p300 = por %p298, %p299
      %p301 = scmp.ne.s32.totalorder %s289, %s290
      %p302 = scmp.eq.s32.totalorder %s28, 1
      %p303 = por %p301, %p302
      %p305 = scmp.ne.s32.totalorder %s290, %s304
      %p306 = scmp.eq.s32.totalorder %s28, 0
      %p307 = por %p305, %p306
      %s308 = ssub.s32 %s22, %s29
      %p309 = scmp.eq.s32.totalorder %s308, 0
      %s311 = sadd.s32 %s310, 1
      %s312 = scalar_select %p309, %s310, %s311
      %p315 = pneg %p309
      %p316 = scmp.eq.s32.totalorder %s22, 1
      %p317 = por %p315, %p316
      %p318 = scmp.ne.s32.totalorder %s310, %s313
      %p319 = scmp.eq.s32.totalorder %s22, 0
      %p320 = por %p318, %p319
      %p321 = scmp.ne.s32.totalorder %s310, %s313
      %p322 = scmp.eq.s32.totalorder %s27, 1
      %p323 = por %p321, %p322
      %p324 = scmp.ne.s32.totalorder %s313, %s314
      %p325 = scmp.eq.s32.totalorder %s27, 0
      %p326 = por %p324, %p325
      %p327 = scmp.ne.s32.totalorder %s313, %s314
      %p328 = scmp.eq.s32.totalorder %s28, 1
      %p329 = por %p327, %p328
      %p331 = scmp.ne.s32.totalorder %s314, %s330
      %p332 = scmp.eq.s32.totalorder %s28, 0
      %p333 = por %p331, %p332
      %p334 = scmp.le.s32.totalorder 1, %s22
      %p335 = scmp.lt.s32.totalorder %s22, 3
      %p336 = pnand %p334, %p335
      %p337 = pneg %p336
      // Predicated region
      $region9: #{tpu_custom_call.1} parent=5 // pred_check
        _
      $region10: #{tpu_custom_call.1} parent=5 // pred_check_branch
        %339 = sbr.rel (%p336) target = $region12
      $region11: #{tpu_custom_call.1} parent=5 // pred_region
        %s340 = ssub.s32 %s22, 1
        // Predicated region
        $region13: #{tpu_custom_call.1} parent=11 // pred_check
          %p341 = pneg %p69
        $region14: #{tpu_custom_call.1} parent=11 // pred_check_branch
          %343 = sbr.rel (%p341) target = $region16
        $region15: #{tpu_custom_call.1} parent=11 // pred_region
          _
        $region16: #{tpu_custom_call.1} parent=11 // pred_fallthru
          _
        // Predicated region
        $region17: #{tpu_custom_call.1} parent=11 // pred_check
          %p344 = pneg %p90
        $region18: #{tpu_custom_call.1} parent=11 // pred_check_branch
          %346 = sbr.rel (%p344) target = $region20
        $region19: #{tpu_custom_call.1} parent=11 // pred_region
          _
        $region20: #{tpu_custom_call.1} parent=11 // pred_fallthru
          _
        // Predicated region
        $region21: #{tpu_custom_call.1} parent=11 // pred_check
          %p347 = pneg %p111
        $region22: #{tpu_custom_call.1} parent=11 // pred_check_branch
          %349 = sbr.rel (%p347) target = $region24
        $region23: #{tpu_custom_call.1} parent=11 // pred_region
          _
        $region24: #{tpu_custom_call.1} parent=11 // pred_fallthru
          _
        // Predicated region
        $region25: #{tpu_custom_call.1} parent=11 // pred_check
          %p350 = pneg %p132
        $region26: #{tpu_custom_call.1} parent=11 // pred_check_branch
          %352 = sbr.rel (%p350) target = $region28
        $region27: #{tpu_custom_call.1} parent=11 // pred_region
          _
        $region28: #{tpu_custom_call.1} parent=11 // pred_fallthru
          _
        // Predicated region
        $region29: #{tpu_custom_call.1} parent=11 // pred_check
          %p353 = pneg %p153
        $region30: #{tpu_custom_call.1} parent=11 // pred_check_branch
          %355 = sbr.rel (%p353) target = $region32
        $region31: #{tpu_custom_call.1} parent=11 // pred_region
          _
        $region32: #{tpu_custom_call.1} parent=11 // pred_fallthru
          _
        // Predicated region
        $region33: #{tpu_custom_call.1} parent=11 // pred_check
          %p356 = pneg %p174
        $region34: #{tpu_custom_call.1} parent=11 // pred_check_branch
          %358 = sbr.rel (%p356) target = $region36
        $region35: #{tpu_custom_call.1} parent=11 // pred_region
          _
        $region36: #{tpu_custom_call.1} parent=11 // pred_fallthru
          _
        // Predicated region
        $region37: #{tpu_custom_call.1} parent=11 // pred_check
          %p359 = pneg %p195
        $region38: #{tpu_custom_call.1} parent=11 // pred_check_branch
          %361 = sbr.rel (%p359) target = $region40
        $region39: #{tpu_custom_call.1} parent=11 // pred_region
          _
        $region40: #{tpu_custom_call.1} parent=11 // pred_fallthru
          _
        // Predicated region
        $region41: #{tpu_custom_call.1} parent=11 // pred_check
          %p362 = pneg %p216
        $region42: #{tpu_custom_call.1} parent=11 // pred_check_branch
          %364 = sbr.rel (%p362) target = $region44
        $region43: #{tpu_custom_call.1} parent=11 // pred_region
          _
        $region44: #{tpu_custom_call.1} parent=11 // pred_fallthru
          _
        // Predicated region
        $region45: #{tpu_custom_call.1} parent=11 // pred_check
          %p365 = pneg %p237
        $region46: #{tpu_custom_call.1} parent=11 // pred_check_branch
          %367 = sbr.rel (%p365) target = $region48
        $region47: #{tpu_custom_call.1} parent=11 // pred_region
          _
        $region48: #{tpu_custom_call.1} parent=11 // pred_fallthru
          _
        // Predicated region
        $region49: #{tpu_custom_call.1} parent=11 // pred_check
          %p368 = pneg %p258
        $region50: #{tpu_custom_call.1} parent=11 // pred_check_branch
          %370 = sbr.rel (%p368) target = $region52
        $region51: #{tpu_custom_call.1} parent=11 // pred_region
          _
        $region52: #{tpu_custom_call.1} parent=11 // pred_fallthru
          _
        // Predicated region
        $region53: #{tpu_custom_call.1} parent=11 // pred_check
          %p371 = pneg %p279
        $region54: #{tpu_custom_call.1} parent=11 // pred_check_branch
          %373 = sbr.rel (%p371) target = $region56
        $region55: #{tpu_custom_call.1} parent=11 // pred_region
          _
        $region56: #{tpu_custom_call.1} parent=11 // pred_fallthru
          _
        // Predicated region
        $region57: #{tpu_custom_call.1} parent=11 // pred_check
          %p374 = pneg %p300
        $region58: #{tpu_custom_call.1} parent=11 // pred_check_branch
          %376 = sbr.rel (%p374) target = $region60
        $region59: #{tpu_custom_call.1} parent=11 // pred_region
          _
        $region60: #{tpu_custom_call.1} parent=11 // pred_fallthru
          _
      $region12: #{tpu_custom_call.1} parent=5 // pred_fallthru
        _
      %p377 = scmp.lt.s32.totalorder %s22, 2
      // Predicated region
      $region61: #{tpu_custom_call.1} parent=5 // pred_check
        %p378 = pneg %p377
      $region62: #{tpu_custom_call.1} parent=5 // pred_check_branch
        %380 = sbr.rel (%p378) target = $region64
      $region63: #{tpu_custom_call.1} parent=5 // pred_region
        // Predicated region
        $region65: #{tpu_custom_call.1} parent=63 // pred_check
          %p381 = pneg %p42
        $region66: #{tpu_custom_call.1} parent=63 // pred_check_branch
          %383 = sbr.rel (%p381) target = $region68
        $region67: #{tpu_custom_call.1} parent=63 // pred_region
          %p384 = scmp.lt.s32.totalorder %s22, 1
          %s385 = scalar_select %p384, %s22, 1
          %s386 = smul.addr %s385, 8
          %s387 = scalar_lea.vmem %s0, %s386
        $region68: #{tpu_custom_call.1} parent=63 // pred_fallthru
          _
      $region64: #{tpu_custom_call.1} parent=5 // pred_fallthru
        _
      %p388 = scmp.le.s32.totalorder 1, %s22
      %p389 = scmp.lt.s32.totalorder %s22, 3
      %p390 = pnand %p388, %p389
      %p391 = pneg %p390
      // Predicated region
      $region69: #{tpu_custom_call.1} parent=5 // pred_check
        _
      $region70: #{tpu_custom_call.1} parent=5 // pred_check_branch
        %393 = sbr.rel (%p390) target = $region72
      $region71: #{tpu_custom_call.1} parent=5 // pred_region
        %s394 = ssub.s32 %s22, 1
        %p395 = scmp.lt.s32.totalorder %s27, 1
        %s396 = scalar_select %p395, %s27, 1
        %s397 = smul.addr %s396, 8
        %s398 = scalar_lea.vmem %s0, %s397
        %p399 = pneg %p48
        %p400 = pneg %p45
        %p401 = pneg %p69
        %p402 = pneg %p66
        %p403 = pneg %p90
        %p404 = pneg %p87
        %p405 = pneg %p111
        %p406 = pneg %p108
        %p407 = pneg %p132
        %p408 = pneg %p129
        %p409 = pneg %p153
        %p410 = pneg %p150
        %p411 = pneg %p174
        %p412 = pneg %p171
        %p413 = pneg %p195
        %p414 = pneg %p192
        %p415 = pneg %p216
        %p416 = pneg %p213
        %p417 = pneg %p237
        %p418 = pneg %p234
        %p419 = pneg %p258
        %p420 = pneg %p255
        %p421 = pneg %p279
        %p422 = pneg %p276
        %p423 = pneg %p300
        %p424 = pneg %p297
        %p425 = pneg %p326
        %p426 = pneg %p323
        %s427 = sand.u32 %s313, 1
        %s428 = scalar_lea.sflag [#allocation3], %s427
        %s429 = sand.u32 %s313, 1
        %s430 = smul.addr %s429, 8
        %s431 = scalar_lea.vmem [#allocation2], %s430
        %p432 = scmp.lt.s32.totalorder %s27, 1
        %s433 = scalar_select %p432, %s27, 1
        %s434 = smul.addr %s433, 8
        %s435 = scalar_lea.vmem %s0, %s434
        %v437 = vld [vmem:[%s1] sm:$0xff]
        %v438 = vld [vmem:[%s435] sm:$0xff]
        %v439 = vadd.f32 %v438, %v437
        %v440 = vpack.c.bf16 %v439, %v439
        %v441 = vld [vmem:[%s2] sm:$0xf]
        %v442 = vld [vmem:[%s2 + $0x4] sm:$0xf]
        %v443 = vld [vmem:[%s2 + $0x8] sm:$0xf]
        %v444 = vld [vmem:[%s2 + $0xc] sm:$0xf]
        %v445 = vld [vmem:[%s3] sm:$0x1]
        %v447 = vperm.slane %v445, 0
        %v453 = vunpack.c.l.b16 %v441
        %v454 = vunpack.c.l.b16 %v442
        %v455 = vunpack.c.l.b16 %v443
        %v456 = vunpack.c.l.b16 %v444
        %v457 = vpack.c.b16 %v454, %v453
        %v458 = vpack.c.b16 %v456, %v455
        %vm461 = vcmask 261120
        %v463 = vsel %vm461, %v440, 0
        %465 = vmatpush.bf16.msra.mxu0 0
        %466 = vmatpush.bf16.msra.mxu0 0
        %467 = vmatpush.bf16.msra.mxu0 0
        %468 = vmatpush.bf16.msra.mxu0 0
        %469 = vmatpush.bf16.msra.mxu0 0
        %470 = vmatpush.bf16.msra.mxu0 0
        %471 = vmatpush.bf16.msra.mxu0 %v458
        %472 = vmatpush.bf16.msra.mxu0 %v457
        %473 = vmatmul.bf16.gmra.mxu0 %v463
        %v474 = vpop.f32.mrf.mxu0
        %v475 = vadd.f32 %v447, %v474
        %v476 = vpop.f32.mrf.mxu0
        %477 = vdwg.mxu0
        %v478 = vld [vmem:[%s4] sm:$0xff]
        %v479 = vld [vmem:[%s4 + $0x8] sm:$0xff]
        %v480 = vld [vmem:[%s4 + $0x10] sm:$0xff]
        %v481 = vld [vmem:[%s4 + $0x18] sm:$0xff]
        %v482 = vld [vmem:[%s4 + $0x20] sm:$0xff]
        %v483 = vld [vmem:[%s4 + $0x28] sm:$0xff]
        %v484 = vld [vmem:[%s4 + $0x30] sm:$0xff]
        %v485 = vld [vmem:[%s4 + $0x38] sm:$0xff]
        %v486 = vmul.f32 %v475, %v478
        %v487 = vmul.f32 %v475, %v479
        %v488 = vmul.f32 %v475, %v480
        %v489 = vmul.f32 %v475, %v481
        %v490 = vmul.f32 %v475, %v482
        %v491 = vmul.f32 %v475, %v483
        %v492 = vmul.f32 %v475, %v484
        %v493 = vmul.f32 %v475, %v485
        %495 = vrot.lane.b32.xlu0 %v475, 96
        %v496 = vpop.permute.xlu0 %495
        %498 = vxpose.xlu0.b32.start [1/16] %v496, 128
        %499 = vxpose.xlu0.b32.cont [2/16] 0.0, 128
        %500 = vxpose.xlu0.b32.cont [3/16] 0.0, 128
        %501 = vxpose.xlu0.b32.cont [4/16] 0.0, 128
        %502 = vxpose.xlu0.b32.cont [5/16] 0.0, 128
        %503 = vxpose.xlu0.b32.cont [6/16] 0.0, 128
        %504 = vxpose.xlu0.b32.cont [7/16] 0.0, 128
        %505 = vxpose.xlu0.b32.cont [8/16] 0.0, 128
        %506 = vxpose.xlu0.b32.cont [9/16] 0.0, 128
        %507 = vxpose.xlu0.b32.cont [10/16] 0.0, 128
        %508 = vxpose.xlu0.b32.cont [11/16] 0.0, 128
        %509 = vxpose.xlu0.b32.cont [12/16] 0.0, 128
        %510 = vxpose.xlu0.b32.cont [13/16] 0.0, 128
        %511 = vxpose.xlu0.b32.cont [14/16] 0.0, 128
        %512 = vxpose.xlu0.b32.cont [15/16] 0.0, 128
        %513 = vxpose.xlu0.b32.end [16/16] 0.0, 128
        %v514 = vpop.trf.xlu0
        %v515 = vpop.trf.xlu0
        %v516 = vpop.trf.xlu0
        %v517 = vpop.trf.xlu0
        %v518 = vpop.trf.xlu0
        %v519 = vpop.trf.xlu0
        %v520 = vpop.trf.xlu0
        %v521 = vpop.trf.xlu0
        %v522 = vpop.trf.xlu0
        %v523 = vpop.trf.xlu0
        %v524 = vpop.trf.xlu0
        %v525 = vpop.trf.xlu0
        %v526 = vpop.trf.xlu0
        %v527 = vpop.trf.xlu0
        %v528 = vpop.trf.xlu0
        %v529 = vpop.trf.xlu0
        %v530 = vpack.c.bf16 %v487, %v486
        %v531 = vpack.c.bf16 %v489, %v488
        %v532 = vpack.c.bf16 %v491, %v490
        %v533 = vpack.c.bf16 %v493, %v492
        %v534 = vpack.c.bf16 %v515, %v514
        %v535 = vpack.c.bf16 %v517, %v516
        %v537 = vsel %vm461, %v530, 0
        %v540 = vsel %vm461, %v531, 0
        %v543 = vsel %vm461, %v532, 0
        %v546 = vsel %vm461, %v533, 0
        %548 = vmatpush.bf16.msra.mxu0 0
        %549 = vmatpush.bf16.msra.mxu0 0
        %550 = vmatpush.bf16.msra.mxu0 0
        %551 = vmatpush.bf16.msra.mxu0 0
        %552 = vmatpush.bf16.msra.mxu0 0
        %553 = vmatpush.bf16.msra.mxu0 0
        %554 = vmatpush.bf16.msra.mxu0 %v535
        %555 = vmatpush.bf16.msra.mxu0 %v534
        %556 = vmatmul.bf16.gmra.mxu0 %v537
        %v557 = vpop.f32.mrf.mxu0
        %v558 = vadd.f32 0.0, %v557
        %v559 = vpop.f32.mrf.mxu0
        %v560 = vadd.f32 0.0, %v559
        %561 = vmatmul.bf16.gmra.mxu0 %v540
        %v562 = vpop.f32.mrf.mxu0
        %v563 = vadd.f32 0.0, %v562
        %v564 = vpop.f32.mrf.mxu0
        %v565 = vadd.f32 0.0, %v564
        %566 = vmatmul.bf16.gmra.mxu0 %v543
        %v567 = vpop.f32.mrf.mxu0
        %v568 = vadd.f32 0.0, %v567
        %v569 = vpop.f32.mrf.mxu0
        %v570 = vadd.f32 0.0, %v569
        %571 = vmatmul.bf16.gmra.mxu0 %v546
        %v572 = vpop.f32.mrf.mxu0
        %v573 = vadd.f32 0.0, %v572
        %v574 = vpop.f32.mrf.mxu0
        %v575 = vadd.f32 0.0, %v574
        %576 = vdwg.mxu0
        %vm577 = vcmask 64512
        %v578 = vsel %vm577, %v558, -inf
        %579 = vmax.xlane.f32.xlu0 %v578
        %v580 = vpop.xlane.xlu0 %579
        %v581 = vsel %vm577, %v560, -inf
        %582 = vmax.xlane.f32.xlu0 %v581
        %v583 = vpop.xlane.xlu0 %582
        %v584 = vsel %vm577, %v563, -inf
        %585 = vmax.xlane.f32.xlu0 %v584
        %v586 = vpop.xlane.xlu0 %585
        %v587 = vsel %vm577, %v565, -inf
        %588 = vmax.xlane.f32.xlu0 %v587
        %v589 = vpop.xlane.xlu0 %588
        %v590 = vsel %vm577, %v568, -inf
        %591 = vmax.xlane.f32.xlu0 %v590
        %v592 = vpop.xlane.xlu0 %591
        %v593 = vsel %vm577, %v570, -inf
        %594 = vmax.xlane.f32.xlu0 %v593
        %v595 = vpop.xlane.xlu0 %594
        %v596 = vsel %vm577, %v573, -inf
        %597 = vmax.xlane.f32.xlu0 %v596
        %v598 = vpop.xlane.xlu0 %597
        %v599 = vsel %vm577, %v575, -inf
        %600 = vmax.xlane.f32.xlu0 %v599
        %v601 = vpop.xlane.xlu0 %600
        %v602 = vsub.f32 %v558, %v580
        %v603 = vsub.f32 %v560, %v583
        %v604 = vsub.f32 %v563, %v586
        %v605 = vsub.f32 %v565, %v589
        %v606 = vsub.f32 %v568, %v592
        %v607 = vsub.f32 %v570, %v595
        %v608 = vsub.f32 %v573, %v598
        %v609 = vsub.f32 %v575, %v601
        %v610 = vmul.f32 %v602, 1.442695
        %v611 = vpow.pop %v610
        %v612 = vmul.f32 %v603, 1.442695
        %v613 = vpow.pop %v612
        %v614 = vmul.f32 %v604, 1.442695
        %v615 = vpow.pop %v614
        %v616 = vmul.f32 %v605, 1.442695
        %v617 = vpow.pop %v616
        %v618 = vmul.f32 %v606, 1.442695
        %v619 = vpow.pop %v618
        %v620 = vmul.f32 %v607, 1.442695
        %v621 = vpow.pop %v620
        %v622 = vmul.f32 %v608, 1.442695
        %v623 = vpow.pop %v622
        %v624 = vmul.f32 %v609, 1.442695
        %v625 = vpow.pop %v624
        %v626 = vsel %vm577, %v611, 0.0
        %627 = vadd.xlane.f32.xlu0 %v626
        %v628 = vpop.xlane.xlu0 %627
        %v629 = vsel %vm577, %v613, 0.0
        %630 = vadd.xlane.f32.xlu0 %v629
        %v631 = vpop.xlane.xlu0 %630
        %v632 = vsel %vm577, %v615, 0.0
        %633 = vadd.xlane.f32.xlu0 %v632
        %v634 = vpop.xlane.xlu0 %633
        %v635 = vsel %vm577, %v617, 0.0
        %636 = vadd.xlane.f32.xlu0 %v635
        %v637 = vpop.xlane.xlu0 %636
        %v638 = vsel %vm577, %v619, 0.0
        %639 = vadd.xlane.f32.xlu0 %v638
        %v640 = vpop.xlane.xlu0 %639
        %v641 = vsel %vm577, %v621, 0.0
        %642 = vadd.xlane.f32.xlu0 %v641
        %v643 = vpop.xlane.xlu0 %642
        %v644 = vsel %vm577, %v623, 0.0
        %645 = vadd.xlane.f32.xlu0 %v644
        %v646 = vpop.xlane.xlu0 %645
        %v647 = vsel %vm577, %v625, 0.0
        %648 = vadd.xlane.f32.xlu0 %v647
        %v649 = vpop.xlane.xlu0 %648
        %v650 = vrcp.pop %v628
        %v651 = vrcp.pop %v631
        %v652 = vrcp.pop %v634
        %v653 = vrcp.pop %v637
        %v654 = vrcp.pop %v640
        %v655 = vrcp.pop %v643
        %v656 = vrcp.pop %v646
        %v657 = vrcp.pop %v649
        %v658 = vmul.f32 %v611, %v650
        %v659 = vmul.f32 %v613, %v651
        %v660 = vmul.f32 %v615, %v652
        %v661 = vmul.f32 %v617, %v653
        %v662 = vmul.f32 %v619, %v654
        %v663 = vmul.f32 %v621, %v655
        %v664 = vmul.f32 %v623, %v656
        %v665 = vmul.f32 %v625, %v657
        %v666 = vpack.c.bf16 %v659, %v658
        %v667 = vpack.c.bf16 %v661, %v660
        %v668 = vpack.c.bf16 %v663, %v662
        %v669 = vpack.c.bf16 %v665, %v664
        %v670 = vpack.c.bf16 %v475, %v475
        %672 = vrot.lane.b32.xlu0 %v670, 64
        %v673 = vpop.permute.xlu0 %672
        %v675 = vsel %vm577, %v666, 0
        %v678 = vsel %vm577, %v667, 0
        %v681 = vsel %vm577, %v668, 0
        %v684 = vsel %vm577, %v669, 0
        %vm686 = vcmask 1043456
        %v688 = vsel %vm686, %v673, 0
        %690 = vmatpush.bf16.msra.mxu0 0
        %691 = vmatpush.bf16.msra.mxu0 0
        %692 = vmatpush.bf16.msra.mxu0 0
        %693 = vmatpush.bf16.msra.mxu0 0
        %694 = vmatpush.bf16.msra.mxu0 0
        %695 = vmatpush.bf16.msra.mxu0 0
        %696 = vmatpush.bf16.msra.mxu0 0
        %697 = vmatpush.bf16.msra.mxu0 %v688
        %698 = vmatmul.bf16.gmra.mxu0 %v675
        %v699 = vpop.f32.mrf.mxu0
        %v700 = vadd.f32 0.0, %v699
        %v701 = vpop.f32.mrf.mxu0
        %v702 = vadd.f32 0.0, %v701
        %703 = vmatmul.bf16.gmra.mxu0 %v678
        %v704 = vpop.f32.mrf.mxu0
        %v705 = vadd.f32 0.0, %v704
        %v706 = vpop.f32.mrf.mxu0
        %v707 = vadd.f32 0.0, %v706
        %708 = vmatmul.bf16.gmra.mxu0 %v681
        %v709 = vpop.f32.mrf.mxu0
        %v710 = vadd.f32 0.0, %v709
        %v711 = vpop.f32.mrf.mxu0
        %v712 = vadd.f32 0.0, %v711
        %713 = vmatmul.bf16.gmra.mxu0 %v684
        %v714 = vpop.f32.mrf.mxu0
        %v715 = vadd.f32 0.0, %v714
        %v716 = vpop.f32.mrf.mxu0
        %v717 = vadd.f32 0.0, %v716
        %718 = vdwg.mxu0
        %v719 = vld [vmem:[%s5] sm:$0xf]
        %v720 = vmul.f32 %v700, %v478
        %v721 = vmul.f32 %v702, %v479
        %v722 = vmul.f32 %v705, %v480
        %v723 = vmul.f32 %v707, %v481
        %v724 = vmul.f32 %v710, %v482
        %v725 = vmul.f32 %v712, %v483
        %v726 = vmul.f32 %v715, %v484
        %v727 = vmul.f32 %v717, %v485
        %v728 = vpack.c.bf16 %v721, %v720
        %v729 = vpack.c.bf16 %v723, %v722
        %v730 = vpack.c.bf16 %v725, %v724
        %v731 = vpack.c.bf16 %v727, %v726
        %vm732 = vcmask 523264
        %v734 = vsel %vm732, %v719, 0
        %736 = vmatpush.bf16.msra.mxu0 0
        %737 = vmatpush.bf16.msra.mxu0 0
        %738 = vmatpush.bf16.msra.mxu0 0
        %739 = vmatpush.bf16.msra.mxu0 0
        %740 = vmatpush.bf16.msra.mxu0 %v731
        %741 = vmatpush.bf16.msra.mxu0 %v730
        %742 = vmatpush.bf16.msra.mxu0 %v729
        %743 = vmatpush.bf16.msra.mxu0 %v728
        %744 = vmatmul.bf16.gmra.mxu0 %v734
        %v745 = vpop.f32.mrf.mxu0
        %v746 = vadd.f32 0.0, %v745
        %v747 = vpop.f32.mrf.mxu0
        %748 = vdwg.mxu0
        %v749 = vld [vmem:[%s7] sm:$0x3f]
        %v750 = vpack.c.bf16 %v746, %v746
        %v751 = vld [vmem:[%s6] sm:$0xf]
        %v752 = vld [vmem:[%s6 + $0x4] sm:$0xf]
        %v753 = vld [vmem:[%s6 + $0x8] sm:$0xf]
        %v754 = vld [vmem:[%s6 + $0xc] sm:$0xf]
        %v755 = vperm.slane %v749, 0
        %v760 = vunpack.c.l.b16 %v751
        %v761 = vunpack.c.l.b16 %v752
        %v762 = vunpack.c.l.b16 %v753
        %v763 = vunpack.c.l.b16 %v754
        %v764 = vpack.c.b16 %v761, %v760
        %v765 = vpack.c.b16 %v763, %v762
        %v769 = vsel %vm461, %v750, 0
        %771 = vmatpush.bf16.msra.mxu0 0
        %772 = vmatpush.bf16.msra.mxu0 0
        %773 = vmatpush.bf16.msra.mxu0 0
        %774 = vmatpush.bf16.msra.mxu0 0
        %775 = vmatpush.bf16.msra.mxu0 0
        %776 = vmatpush.bf16.msra.mxu0 0
        %777 = vmatpush.bf16.msra.mxu0 %v765
        %778 = vmatpush.bf16.msra.mxu0 %v764
        %779 = vmatmul.bf16.gmra.mxu0 %v769
        %v780 = vpop.f32.mrf.mxu0
        %v781 = vadd.f32 %v755, %v780
        %v782 = vpop.f32.mrf.mxu0
        %783 = vdwg.mxu0
        %v784 = vadd.f32 %v439, %v781
        %v785 = vsel %vm461, %v784, 0.0
        %786 = vadd.xlane.f32.xlu0 %v785
        %v787 = vpop.xlane.xlu0 %786
        %v788 = vrcp.pop 32.0
        %v789 = vmul.f32 32.0, %v788
        %v790 = vsub.f32 1.0, %v789
        %v791 = vmul.f32 %v788, %v790
        %v792 = vadd.f32 %v788, %v791
        %vm793 = vweird.f32 %v788
        %v794 = vsel %vm793, %v788, %v792
        %v795 = vmul.f32 %v787, %v794
        %v796 = vsub.f32 %v784, %v795
        %v797 = vmul.f32 %v796, %v796
        %v798 = vsel %vm461, %v797, 0.0
        %799 = vadd.xlane.f32.xlu0 %v798
        %v800 = vpop.xlane.xlu0 %799
        %v801 = vmul.f32 %v800, %v794
        %v802 = vadd.f32 %v801, 1e-05
        %v803 = vrsqrt.pop %v802
        %v804 = vmul.f32 %v803, %v802
        %v805 = vmul.f32 %v804, %v803
        %v806 = vmul.f32 0.5, %v805
        %v807 = vsub.f32 1.5, %v806
        %v808 = vmul.f32 %v803, %v807
        %vm809 = vweird.f32 %v802
        %vm810 = vweird.f32 %v803
        %vm811 = vmor %vm809, %vm810
        %v812 = vsel %vm811, %v803, %v808
        %v813 = vmul.f32 %v796, %v812
        %v814 = vperm.slane %v749, 1
        %v815 = vmul.f32 %v813, %v814
        %v816 = vperm.slane %v749, 2
        %v817 = vadd.f32 %v815, %v816
        %v818 = vpack.c.bf16 %v817, %v817
        %v819 = vld [vmem:[%s8] sm:$0xf]
        %v820 = vld [vmem:[%s8 + $0x4] sm:$0xf]
        %v821 = vld [vmem:[%s8 + $0x8] sm:$0xf]
        %v822 = vld [vmem:[%s8 + $0xc] sm:$0xf]
        %v823 = vld [vmem:[%s9] sm:$0x1]
        %v825 = vperm.slane %v823, 0
        %v831 = vunpack.c.l.b16 %v819
        %v832 = vunpack.c.l.b16 %v820
        %v833 = vunpack.c.l.b16 %v821
        %v834 = vunpack.c.l.b16 %v822
        %v835 = vpack.c.b16 %v832, %v831
        %v836 = vpack.c.b16 %v834, %v833
        %v840 = vsel %vm461, %v818, 0
        %842 = vmatpush.bf16.msra.mxu0 0
        %843 = vmatpush.bf16.msra.mxu0 0
        %844 = vmatpush.bf16.msra.mxu0 0
        %845 = vmatpush.bf16.msra.mxu0 0
        %846 = vmatpush.bf16.msra.mxu0 0
        %847 = vmatpush.bf16.msra.mxu0 0
        %848 = vmatpush.bf16.msra.mxu0 %v836
        %849 = vmatpush.bf16.msra.mxu0 %v835
        %850 = vmatmul.bf16.gmra.mxu0 %v840
        %v851 = vpop.f32.mrf.mxu0
        %v852 = vadd.f32 %v825, %v851
        %v853 = vpop.f32.mrf.mxu0
        %854 = vdwg.mxu0
        %v855 = vmul.f32 %v852, 0.5
        %v856 = vmul.f32 %v852, 0.044715
        %v857 = vmul.f32 %v856, %v852
        %v858 = vmul.f32 %v857, %v852
        %v859 = vadd.f32 %v852, %v858
        %v860 = vmul.f32 %v859, 0.7978846
        %v861 = vtanh.pop %v860
        %v862 = vadd.f32 %v861, 1.0
        %v863 = vmul.f32 %v855, %v862
        %v864 = vpack.c.bf16 %v863, %v863
        %v865 = vld [vmem:[%s10] sm:$0xf]
        %v866 = vld [vmem:[%s10 + $0x4] sm:$0xf]
        %v867 = vld [vmem:[%s10 + $0x8] sm:$0xf]
        %v868 = vld [vmem:[%s10 + $0xc] sm:$0xf]
        %v869 = vld [vmem:[%s10 + $0x10] sm:$0xf]
        %v870 = vld [vmem:[%s10 + $0x14] sm:$0xf]
        %v871 = vld [vmem:[%s10 + $0x18] sm:$0xf]
        %v872 = vld [vmem:[%s10 + $0x1c] sm:$0xf]
        %v873 = vld [vmem:[%s10 + $0x20] sm:$0xf]
        %v874 = vld [vmem:[%s10 + $0x24] sm:$0xf]
        %v875 = vld [vmem:[%s10 + $0x28] sm:$0xf]
        %v876 = vld [vmem:[%s10 + $0x2c] sm:$0xf]
        %v877 = vld [vmem:[%s10 + $0x30] sm:$0xf]
        %v878 = vld [vmem:[%s10 + $0x34] sm:$0xf]
        %v879 = vld [vmem:[%s10 + $0x38] sm:$0xf]
        %v880 = vld [vmem:[%s10 + $0x3c] sm:$0xf]
        %v881 = vperm.slane %v749, 3
        %v898 = vunpack.c.l.b16 %v865
        %v899 = vunpack.c.l.b16 %v866
        %v900 = vunpack.c.l.b16 %v867
        %v901 = vunpack.c.l.b16 %v868
        %v902 = vunpack.c.l.b16 %v869
        %v903 = vunpack.c.l.b16 %v870
        %v904 = vunpack.c.l.b16 %v871
        %v905 = vunpack.c.l.b16 %v872
        %v906 = vunpack.c.l.b16 %v873
        %v907 = vunpack.c.l.b16 %v874
        %v908 = vunpack.c.l.b16 %v875
        %v909 = vunpack.c.l.b16 %v876
        %v910 = vunpack.c.l.b16 %v877
        %v911 = vunpack.c.l.b16 %v878
        %v912 = vunpack.c.l.b16 %v879
        %v913 = vunpack.c.l.b16 %v880
        %v914 = vpack.c.b16 %v899, %v898
        %v915 = vpack.c.b16 %v901, %v900
        %v916 = vpack.c.b16 %v903, %v902
        %v917 = vpack.c.b16 %v905, %v904
        %v918 = vpack.c.b16 %v907, %v906
        %v919 = vpack.c.b16 %v909, %v908
        %v920 = vpack.c.b16 %v911, %v910
        %v921 = vpack.c.b16 %v913, %v912
        %930 = vmatpush.bf16.msra.mxu0 %v921
        %931 = vmatpush.bf16.msra.mxu0 %v920
        %932 = vmatpush.bf16.msra.mxu0 %v919
        %933 = vmatpush.bf16.msra.mxu0 %v918
        %934 = vmatpush.bf16.msra.mxu0 %v917
        %935 = vmatpush.bf16.msra.mxu0 %v916
        %936 = vmatpush.bf16.msra.mxu0 %v915
        %937 = vmatpush.bf16.msra.mxu0 %v914
        %938 = vmatmul.bf16.gmra.mxu0 %v864
        %v939 = vpop.f32.mrf.mxu0
        %v940 = vadd.f32 %v881, %v939
        %v941 = vpop.f32.mrf.mxu0
        %942 = vdwg.mxu0
        %v943 = vadd.f32 %v817, %v940
        %v944 = vsel %vm461, %v943, 0.0
        %945 = vadd.xlane.f32.xlu0 %v944
        %v946 = vpop.xlane.xlu0 %945
        %v947 = vmul.f32 %v946, %v794
        %v948 = vsub.f32 %v943, %v947
        %v949 = vmul.f32 %v948, %v948
        %v950 = vsel %vm461, %v949, 0.0
        %951 = vadd.xlane.f32.xlu0 %v950
        %v952 = vpop.xlane.xlu0 %951
        %v953 = vmul.f32 %v952, %v794
        %v954 = vadd.f32 %v953, 1e-05
        %v955 = vrsqrt.pop %v954
        %v956 = vmul.f32 %v955, %v954
        %v957 = vmul.f32 %v956, %v955
        %v958 = vmul.f32 0.5, %v957
        %v959 = vsub.f32 1.5, %v958
        %v960 = vmul.f32 %v955, %v959
        %vm961 = vweird.f32 %v954
        %vm962 = vweird.f32 %v955
        %vm963 = vmor %vm961, %vm962
        %v964 = vsel %vm963, %v955, %v960
        %v965 = vmul.f32 %v948, %v964
        %v966 = vperm.slane %v749, 4
        %v967 = vmul.f32 %v965, %v966
        %v968 = vperm.slane %v749, 5
        %v969 = vadd.f32 %v967, %v968
        %v970 = vpack.c.bf16 %v969, %v969
        %v971 = vld [vmem:[%s11] sm:$0xf]
        %v972 = vld [vmem:[%s11 + $0x4] sm:$0xf]
        %v973 = vld [vmem:[%s11 + $0x8] sm:$0xf]
        %v974 = vld [vmem:[%s11 + $0xc] sm:$0xf]
        %v975 = vld [vmem:[%s12] sm:$0x1]
        %v977 = vperm.slane %v975, 0
        %v983 = vunpack.c.l.b16 %v971
        %v984 = vunpack.c.l.b16 %v972
        %v985 = vunpack.c.l.b16 %v973
        %v986 = vunpack.c.l.b16 %v974
        %v987 = vpack.c.b16 %v984, %v983
        %v988 = vpack.c.b16 %v986, %v985
        %v992 = vsel %vm461, %v970, 0
        %994 = vmatpush.bf16.msra.mxu0 0
        %995 = vmatpush.bf16.msra.mxu0 0
        %996 = vmatpush.bf16.msra.mxu0 0
        %997 = vmatpush.bf16.msra.mxu0 0
        %998 = vmatpush.bf16.msra.mxu0 0
        %999 = vmatpush.bf16.msra.mxu0 0
        %1000 = vmatpush.bf16.msra.mxu0 %v988
        %1001 = vmatpush.bf16.msra.mxu0 %v987
        %1002 = vmatmul.bf16.gmra.mxu0 %v992
        %v1003 = vpop.f32.mrf.mxu0
        %v1004 = vadd.f32 %v977, %v1003
        %v1005 = vpop.f32.mrf.mxu0
        %1006 = vdwg.mxu0
        %1007 = vst [vmem:[%s431] sm:$0xff] %v1004
        %s1008 = sand.u32 %s313, 1
        %s1009 = scalar_lea.sflag [#allocation3], %s1008
        %s1010 = sand.u32 %s313, 1
        %s1011 = smul.addr %s1010, 8
        %s1012 = scalar_lea.vmem [#allocation2], %s1011
        // Predicated region
        $region73: #{tpu_custom_call.1} parent=71 // pred_check
          %p1013 = pneg %p323
        $region74: #{tpu_custom_call.1} parent=71 // pred_check_branch
          %1015 = sbr.rel (%p1013) target = $region76
        $region75: #{tpu_custom_call.1} parent=71 // pred_region
          %1017 = vsyncadd %s1009, 0
          %s1018 = smul.addr %s27, 8
          %s1019 = scalar_lea.hbm %s13, %s1018
          %s1021 = sshll.u32 %s1012, 4
          %s1022 = int_to_ptr.vmem [resolvable:$true] %s1021
          %s1023 = sshll.u32 %s1019, 4
          %s1024 = int_to_ptr.hbm [resolvable:$true] %s1023
          %1026 = dma.vmem_to_hbm [thread:$0]  %s1022, 128, %s1024, %s1009
        $region76: #{tpu_custom_call.1} parent=71 // pred_fallthru
          _
      $region72: #{tpu_custom_call.1} parent=5 // pred_fallthru
        _
      %p1027 = scmp.le.s32.totalorder 2, %s22
      // Predicated region
      $region77: #{tpu_custom_call.1} parent=5 // pred_check
        %p1028 = pneg %p1027
      $region78: #{tpu_custom_call.1} parent=5 // pred_check_branch
        %1030 = sbr.rel (%p1028) target = $region80
      $region79: #{tpu_custom_call.1} parent=5 // pred_region
        %s1031 = ssub.s32 %s22, 2
        // Predicated region
        $region81: #{tpu_custom_call.1} parent=79 // pred_check
          %p1032 = pneg %p329
        $region82: #{tpu_custom_call.1} parent=79 // pred_check_branch
          %1034 = sbr.rel (%p1032) target = $region84
        $region83: #{tpu_custom_call.1} parent=79 // pred_region
          %s1035 = sand.u32 %s314, 1
          %s1036 = scalar_lea.sflag [#allocation3], %s1035
          %s1037 = sand.u32 %s314, 1
          %s1038 = smul.addr %s1037, 8
          %s1039 = scalar_lea.vmem [#allocation2], %s1038
          %1041 = dma.done %s1036, 128
        $region84: #{tpu_custom_call.1} parent=79 // pred_fallthru
          _
      $region80: #{tpu_custom_call.1} parent=5 // pred_fallthru
        _
    $region6: #{tpu_custom_call.1} parent=1 // loop_footer
      %s26 = sadd.s32 1, %s22
    $region7: #{tpu_custom_call.1} parent=1 // loop_footer_branch
      %21 = sbr.rel target = $region3
    $region8: #{tpu_custom_call.1} parent=1 // loop_exit
      _
    %1042 = vsyncpa [#allocation3], 1
    %s1043 = scalar_lea.sflag [#allocation3], 1
    %1044 = vsyncpa %s1043, 1

</llo_original>
